<compile_context>
chip_gen: v5e
topology: v5e:2x2
jax: 0.10.0
libtpu: 0.0.40
codegen_flags: <defaults>
</compile_context>

<pallas_src>
import functools
import math

import jax
import jax.numpy as jnp
from jax.experimental import pallas as pl
from jax.experimental.pallas import tpu as pltpu


# ----------------------------------------------------------------------------
# Kernel 1: DynamicPosBias MLP over the relative-coordinate table.
# ----------------------------------------------------------------------------
def _linear_unrolled(x, w, b):
    """x: (L, K) @ w: (K, P) + b: (1, P), with tiny K unrolled on the VPU."""
    acc = jnp.broadcast_to(b, (x.shape[0], w.shape[1])).astype(jnp.float32)
    for j in range(w.shape[0]):
        acc = acc + x[:, j:j + 1] * w[j:j + 1, :]
    return acc


def pos_bias_kernel(biases_ref, w0_ref, b0_ref,
                    g1_ref, be1_ref, w1_ref, b1_ref,
                    g2_ref, be2_ref, w2_ref, b2_ref,
                    g3_ref, be3_ref, w3_ref, b3_ref,
                    o_ref):
    def ln(t, g, b):
        mu = jnp.mean(t, axis=-1, keepdims=True)
        var = jnp.mean(jnp.square(t - mu), axis=-1, keepdims=True)
        return (t - mu) * jax.lax.rsqrt(var + 1e-5) * g + b

    z = biases_ref[...].astype(jnp.float32)                       # (L, 2)
    h = _linear_unrolled(z, w0_ref[...], b0_ref[...])              # pos_proj
    h = _linear_unrolled(jnp.maximum(ln(h, g1_ref[...], be1_ref[...]), 0.0),
                         w1_ref[...], b1_ref[...])                 # pos1
    h = _linear_unrolled(jnp.maximum(ln(h, g2_ref[...], be2_ref[...]), 0.0),
                         w2_ref[...], b2_ref[...])                 # pos2
    h = _linear_unrolled(jnp.maximum(ln(h, g3_ref[...], be3_ref[...]), 0.0),
                         w3_ref[...], b3_ref[...])                 # pos3
    o_ref[...] = h.astype(o_ref.dtype)                             # (L, heads)


# ----------------------------------------------------------------------------
# Kernel 2: fused per-batch attention (all heads) + output projection.
# ----------------------------------------------------------------------------
def attn_kernel(x_ref, wqkv_ref, bqkv_ref, bias_ref, wo_ref, bo_ref, o_ref,
                qkv_ref, ctx_ref, *, scale, num_heads):
    N = x_ref.shape[1]
    C = x_ref.shape[2]
    D = C // num_heads

    x = x_ref[0]                                                   # (N, C)
    # Single big QKV projection for all heads: (N, C) @ (C, 3C) + (1, 3C).
    qkv_ref[...] = (jnp.dot(x, wqkv_ref[...],
                            preferred_element_type=jnp.float32)
                    + bqkv_ref[...])                               # (N, 3C)

    # Unrolled per-head attention core (heads is small).
    for h in range(num_heads):
        qh = qkv_ref[:, h * D:(h + 1) * D] * scale                 # (N, D)
        kh = qkv_ref[:, C + h * D:C + (h + 1) * D]                 # (N, D)
        vh = qkv_ref[:, 2 * C + h * D:2 * C + (h + 1) * D]         # (N, D)

        # q @ k^T without materializing a transpose.
        s = jax.lax.dot_general(qh, kh, (((1,), (1,)), ((), ())),
                                preferred_element_type=jnp.float32)  # (N, N)
        s = s + bias_ref[h]                                        # + pos bias
        s = s - jnp.max(s, axis=-1, keepdims=True)
        e = jnp.exp(s)
        p = e / jnp.sum(e, axis=-1, keepdims=True)                 # softmax

        ctx_ref[:, h * D:(h + 1) * D] = jnp.dot(
            p, vh, preferred_element_type=jnp.float32)             # (N, D)

    # Single output projection over all heads at once: (N, C) @ (C, C).
    o_ref[0] = (jnp.dot(ctx_ref[...], wo_ref[...],
                        preferred_element_type=jnp.float32)
                + bo_ref[...]).astype(o_ref.dtype)


# ----------------------------------------------------------------------------
# Geometry helpers (same math as the PyTorch forward).
# ----------------------------------------------------------------------------
def _pos_geometry(Gh, Gw):
    pbh = jnp.arange(1 - Gh, Gh)
    pbw = jnp.arange(1 - Gw, Gw)
    biases = jnp.stack(jnp.meshgrid(pbh, pbw, indexing="ij"))      # (2, ., .)
    biases = biases.reshape(2, -1).T.astype(jnp.float32)           # (L, 2)

    ch = jnp.arange(Gh)
    cw = jnp.arange(Gw)
    coords = jnp.stack(jnp.meshgrid(ch, cw, indexing="ij"))        # (2, Gh, Gw)
    cf = coords.reshape(2, -1)                                     # (2, N)
    rc = (cf[:, :, None] - cf[:, None, :]).transpose(1, 2, 0)      # (N, N, 2)
    rc = rc.at[:, :, 0].add(Gh - 1)
    rc = rc.at[:, :, 1].add(Gw - 1)
    rc = rc.at[:, :, 0].multiply(2 * Gw - 1)
    rpi = rc.sum(-1).astype(jnp.int32)                             # (N, N)
    return biases, rpi


# ----------------------------------------------------------------------------
# Wrapper.
# ----------------------------------------------------------------------------
def attention_pallas(x, Gh, Gw, p, num_heads, qk_scale=None):
    """x: (B_, N, C) with N == Gh*Gw. Params `p` in math layout (y = x @ W + b)."""
    B_, N, C = x.shape
    assert Gh * Gw == N
    assert C % num_heads == 0
    D = C // num_heads
    scale = qk_scale if qk_scale is not None else D ** (-0.5)

    # ---- DynamicPosBias table (Pallas kernel) + gather to (heads, N, N) ----
    biases, rpi = _pos_geometry(Gh, Gw)
    L = biases.shape[0]
    r2 = lambda a: a.reshape(1, -1)
    pos = pl.pallas_call(
        pos_bias_kernel,
        out_shape=jax.ShapeDtypeStruct((L, num_heads), jnp.float32),
    )(biases,
      p["w0"], r2(p["b0"]),
      r2(p["g1"]), r2(p["be1"]), p["w1"], r2(p["b1"]),
      r2(p["g2"]), r2(p["be2"]), p["w2"], r2(p["b2"]),
      r2(p["g3"]), r2(p["be3"]), p["w3"], r2(p["b3"]))
    # tiny-table gather done with XLA in the wrapper
    rel_bias = jnp.take(pos, rpi.reshape(-1), axis=0)
    rel_bias = rel_bias.reshape(N, N, num_heads).transpose(2, 0, 1)  # (H, N, N)

    Wqkv = p["Wqkv"]                       # (C, 3C), columns laid out [Q|K|V],
    bqkv = p["bqkv"].reshape(1, 3 * C)     # each grouped head-major (H, D).
    Wo = p["Wproj"]                        # (C, C)
    bo = p["bproj"].reshape(1, C)

    # ---- Fused attention kernel: one grid step per batch element ----
    out = pl.pallas_call(
        functools.partial(attn_kernel, scale=float(scale), num_heads=num_heads),
        out_shape=jax.ShapeDtypeStruct((B_, N, C), x.dtype),
        grid_spec=pltpu.PrefetchScalarGridSpec(
            num_scalar_prefetch=0,
            grid=(B_,),
            in_specs=[
                pl.BlockSpec((1, N, C), lambda b: (b, 0, 0)),          # x
                pl.BlockSpec((C, 3 * C), lambda b: (0, 0)),            # Wqkv
                pl.BlockSpec((1, 3 * C), lambda b: (0, 0)),            # bqkv
                pl.BlockSpec((num_heads, N, N), lambda b: (0, 0, 0)),  # pos bias
                pl.BlockSpec((C, C), lambda b: (0, 0)),                # Wproj
                pl.BlockSpec((1, C), lambda b: (0, 0)),                # bproj
            ],
            out_specs=pl.BlockSpec((1, N, C), lambda b: (b, 0, 0)),
            scratch_shapes=[
                pltpu.VMEM((N, 3 * C), jnp.float32),   # qkv buffer
                pltpu.VMEM((N, C), jnp.float32),       # per-head context buffer
            ],
        ),
        compiler_params=pltpu.CompilerParams(
            dimension_semantics=("parallel",)),
    )(x, Wqkv, bqkv, rel_bias, Wo, bo)
    return out


# ----------------------------------------------------------------------------
# Pure-JAX reference of the PyTorch forward (mask=None, dropout p=0.0).
# ----------------------------------------------------------------------------
def reference_forward(x, Gh, Gw, p, num_heads, qk_scale=None):
    B_, N, C = x.shape
    D = C // num_heads
    scale = qk_scale if qk_scale is not None else D ** (-0.5)

    qkv = x @ p["Wqkv"] + p["bqkv"]
    qkv = qkv.reshape(B_, N, 3, num_heads, D).transpose(2, 0, 3, 1, 4)
    q, k, v = qkv[0], qkv[1], qkv[2]
    q = q * scale
    attn = jnp.einsum("bhnd,bhmd->bhnm", q, k)

    biases, rpi = _pos_geometry(Gh, Gw)

    def ln(t, g, b):
        mu = t.mean(-1, keepdims=True)
        var = ((t - mu) ** 2).mean(-1, keepdims=True)
        return (t - mu) / jnp.sqrt(var + 1e-5) * g + b

    h0 = biases @ p["w0"] + p["b0"]
    h1 = jax.nn.relu(ln(h0, p["g1"], p["be1"])) @ p["w1"] + p["b1"]
    h2 = jax.nn.relu(ln(h1, p["g2"], p["be2"])) @ p["w2"] + p["b2"]
    pos = jax.nn.relu(ln(h2, p["g3"], p["be3"])) @ p["w3"] + p["b3"]
    rel = pos[rpi.reshape(-1)].reshape(N, N, num_heads).transpose(2, 0, 1)

    attn = attn + rel[None]
    attn = jax.nn.softmax(attn, axis=-1)
    out = jnp.einsum("bhnm,bhmd->bhnd", attn, v)
    out = out.transpose(0, 2, 1, 3).reshape(B_, N, C)
    return out @ p["Wproj"] + p["bproj"]


if __name__ == "__main__":
    # Small shapes consistent with the module: grouped tokens (B_, N, C).
    B_ = 2
    Gh = Gw = 4
    N = Gh * Gw            # 16 tokens per group
    C = 64                 # dim
    num_heads = 4          # head_dim = 16
    P = C // 16            # DynamicPosBias pos_dim = (dim//4)//4

    key = jax.random.PRNGKey(0)
    ks = jax.random.split(key, 20)

    def uni(k, shape, fan_in):
        b = 1.0 / math.sqrt(fan_in)
        return jax.random.uniform(k, shape, jnp.float32, minval=-b, maxval=b)

    params = {
        "Wqkv": uni(ks[0], (C, 3 * C), C),
        "bqkv": uni(ks[1], (3 * C,), C),
        "Wproj": uni(ks[2], (C, C), C),
        "bproj": uni(ks[3], (C,), C),
        "w0": uni(ks[4], (2, P), 2),
        "b0": uni(ks[5], (P,), 2),
        "g1": 1.0 + 0.1 * jax.random.normal(ks[6], (P,), jnp.float32),
        "be1": 0.1 * jax.random.normal(ks[7], (P,), jnp.float32),
        "w1": uni(ks[8], (P, P), P),
        "b1": uni(ks[9], (P,), P),
        "g2": 1.0 + 0.1 * jax.random.normal(ks[10], (P,), jnp.float32),
        "be2": 0.1 * jax.random.normal(ks[11], (P,), jnp.float32),
        "w2": uni(ks[12], (P, P), P),
        "b2": uni(ks[13], (P,), P),
        "g3": 1.0 + 0.1 * jax.random.normal(ks[14], (P,), jnp.float32),
        "be3": 0.1 * jax.random.normal(ks[15], (P,), jnp.float32),
        "w3": uni(ks[16], (P, num_heads), P),
        "b3": uni(ks[17], (num_heads,), P),
    }
    x = jax.random.normal(ks[18], (B_, N, C), dtype=jnp.float32)

    out = attention_pallas(x, Gh, Gw, params, num_heads)
    jax.block_until_ready(out)

    ref = reference_forward(x, Gh, Gw, params, num_heads)
    assert out.shape == (B_, N, C)
    assert jnp.allclose(out, ref, atol=1e-4, rtol=1e-4), "mismatch vs reference"

    print("KERNEL_OK")
</pallas_src>

<mosaic_0001>
module attributes {stable_mosaic.version = 11 : i64} {
  func.func @pos_bias_kernel(%arg0: memref<49x2xf32, #tpu.memory_space<vmem>>, %arg1: memref<2x4xf32, #tpu.memory_space<vmem>>, %arg2: memref<1x4xf32, #tpu.memory_space<vmem>>, %arg3: memref<1x4xf32, #tpu.memory_space<vmem>>, %arg4: memref<1x4xf32, #tpu.memory_space<vmem>>, %arg5: memref<4x4xf32, #tpu.memory_space<vmem>>, %arg6: memref<1x4xf32, #tpu.memory_space<vmem>>, %arg7: memref<1x4xf32, #tpu.memory_space<vmem>>, %arg8: memref<1x4xf32, #tpu.memory_space<vmem>>, %arg9: memref<4x4xf32, #tpu.memory_space<vmem>>, %arg10: memref<1x4xf32, #tpu.memory_space<vmem>>, %arg11: memref<1x4xf32, #tpu.memory_space<vmem>>, %arg12: memref<1x4xf32, #tpu.memory_space<vmem>>, %arg13: memref<4x4xf32, #tpu.memory_space<vmem>>, %arg14: memref<1x4xf32, #tpu.memory_space<vmem>>, %arg15: memref<49x4xf32, #tpu.memory_space<vmem>>) attributes {dimension_semantics = [], scalar_prefetch = 0 : i64, scratch_operands = 0 : i64, tpu.core_type = #tpu.core_type<tc>} {
    %c0 = arith.constant 0 : index
    %c0_0 = arith.constant 0 : index
    %0 = vector.load %arg0[%c0, %c0_0] : memref<49x2xf32, #tpu.memory_space<vmem>>, vector<49x2xf32>
    %c0_1 = arith.constant 0 : index
    %c0_2 = arith.constant 0 : index
    %1 = vector.load %arg1[%c0_1, %c0_2] : memref<2x4xf32, #tpu.memory_space<vmem>>, vector<2x4xf32>
    %c0_3 = arith.constant 0 : index
    %c0_4 = arith.constant 0 : index
    %2 = vector.load %arg2[%c0_3, %c0_4] : memref<1x4xf32, #tpu.memory_space<vmem>>, vector<1x4xf32>
    %3 = vector.shape_cast %2 : vector<1x4xf32> to vector<1x4xf32>
    %4 = vector.broadcast %3 : vector<1x4xf32> to vector<49x4xf32>
    %5 = vector.extract_strided_slice %0 {offsets = [0, 0], sizes = [49, 1], strides = [1, 1]} : vector<49x2xf32> to vector<49x1xf32>
    %6 = vector.extract_strided_slice %1 {offsets = [0, 0], sizes = [1, 4], strides = [1, 1]} : vector<2x4xf32> to vector<1x4xf32>
    %7 = vector.broadcast %5 : vector<49x1xf32> to vector<49x4xf32>
    %8 = vector.broadcast %6 : vector<1x4xf32> to vector<49x4xf32>
    %9 = arith.mulf %7, %8 : vector<49x4xf32>
    %10 = arith.addf %4, %9 : vector<49x4xf32>
    %11 = vector.extract_strided_slice %0 {offsets = [0, 1], sizes = [49, 1], strides = [1, 1]} : vector<49x2xf32> to vector<49x1xf32>
    %12 = vector.extract_strided_slice %1 {offsets = [1, 0], sizes = [1, 4], strides = [1, 1]} : vector<2x4xf32> to vector<1x4xf32>
    %13 = vector.broadcast %11 : vector<49x1xf32> to vector<49x4xf32>
    %14 = vector.broadcast %12 : vector<1x4xf32> to vector<49x4xf32>
    %15 = arith.mulf %13, %14 : vector<49x4xf32>
    %16 = arith.addf %10, %15 : vector<49x4xf32>
    %c0_5 = arith.constant 0 : index
    %c0_6 = arith.constant 0 : index
    %17 = vector.load %arg3[%c0_5, %c0_6] : memref<1x4xf32, #tpu.memory_space<vmem>>, vector<1x4xf32>
    %c0_7 = arith.constant 0 : index
    %c0_8 = arith.constant 0 : index
    %18 = vector.load %arg4[%c0_7, %c0_8] : memref<1x4xf32, #tpu.memory_space<vmem>>, vector<1x4xf32>
    %cst = arith.constant dense<0.000000e+00> : vector<49xf32>
    %19 = vector.multi_reduction <add>, %16, %cst [1] : vector<49x4xf32> to vector<49xf32>
    %20 = vector.shape_cast %19 : vector<49xf32> to vector<49x1xf32>
    %cst_9 = arith.constant 4.000000e+00 : f32
    %21 = vector.broadcast %cst_9 : f32 to vector<49x1xf32>
    %22 = arith.divf %20, %21 : vector<49x1xf32>
    %23 = vector.broadcast %22 : vector<49x1xf32> to vector<49x4xf32>
    %24 = arith.subf %16, %23 : vector<49x4xf32>
    %25 = arith.mulf %24, %24 : vector<49x4xf32>
    %cst_10 = arith.constant dense<0.000000e+00> : vector<49xf32>
    %26 = vector.multi_reduction <add>, %25, %cst_10 [1] : vector<49x4xf32> to vector<49xf32>
    %27 = vector.shape_cast %26 : vector<49xf32> to vector<49x1xf32>
    %cst_11 = arith.constant 4.000000e+00 : f32
    %28 = vector.broadcast %cst_11 : f32 to vector<49x1xf32>
    %29 = arith.divf %27, %28 : vector<49x1xf32>
    %30 = vector.broadcast %22 : vector<49x1xf32> to vector<49x4xf32>
    %31 = arith.subf %16, %30 : vector<49x4xf32>
    %cst_12 = arith.constant 9.99999974E-6 : f32
    %32 = vector.broadcast %cst_12 : f32 to vector<49x1xf32>
    %33 = arith.addf %29, %32 : vector<49x1xf32>
    %34 = math.rsqrt %33 : vector<49x1xf32>
    %35 = vector.broadcast %34 : vector<49x1xf32> to vector<49x4xf32>
    %36 = arith.mulf %31, %35 : vector<49x4xf32>
    %37 = vector.broadcast %17 : vector<1x4xf32> to vector<49x4xf32>
    %38 = arith.mulf %36, %37 : vector<49x4xf32>
    %39 = vector.broadcast %18 : vector<1x4xf32> to vector<49x4xf32>
    %40 = arith.addf %38, %39 : vector<49x4xf32>
    %cst_13 = arith.constant 0.000000e+00 : f32
    %41 = vector.broadcast %cst_13 : f32 to vector<49x4xf32>
    %42 = arith.maximumf %40, %41 : vector<49x4xf32>
    %c0_14 = arith.constant 0 : index
    %c0_15 = arith.constant 0 : index
    %43 = vector.load %arg5[%c0_14, %c0_15] : memref<4x4xf32, #tpu.memory_space<vmem>>, vector<4x4xf32>
    %c0_16 = arith.constant 0 : index
    %c0_17 = arith.constant 0 : index
    %44 = vector.load %arg6[%c0_16, %c0_17] : memref<1x4xf32, #tpu.memory_space<vmem>>, vector<1x4xf32>
    %45 = vector.shape_cast %44 : vector<1x4xf32> to vector<1x4xf32>
    %46 = vector.broadcast %45 : vector<1x4xf32> to vector<49x4xf32>
    %47 = vector.extract_strided_slice %42 {offsets = [0, 0], sizes = [49, 1], strides = [1, 1]} : vector<49x4xf32> to vector<49x1xf32>
    %48 = vector.extract_strided_slice %43 {offsets = [0, 0], sizes = [1, 4], strides = [1, 1]} : vector<4x4xf32> to vector<1x4xf32>
    %49 = vector.broadcast %47 : vector<49x1xf32> to vector<49x4xf32>
    %50 = vector.broadcast %48 : vector<1x4xf32> to vector<49x4xf32>
    %51 = arith.mulf %49, %50 : vector<49x4xf32>
    %52 = arith.addf %46, %51 : vector<49x4xf32>
    %53 = vector.extract_strided_slice %42 {offsets = [0, 1], sizes = [49, 1], strides = [1, 1]} : vector<49x4xf32> to vector<49x1xf32>
    %54 = vector.extract_strided_slice %43 {offsets = [1, 0], sizes = [1, 4], strides = [1, 1]} : vector<4x4xf32> to vector<1x4xf32>
    %55 = vector.broadcast %53 : vector<49x1xf32> to vector<49x4xf32>
    %56 = vector.broadcast %54 : vector<1x4xf32> to vector<49x4xf32>
    %57 = arith.mulf %55, %56 : vector<49x4xf32>
    %58 = arith.addf %52, %57 : vector<49x4xf32>
    %59 = vector.extract_strided_slice %42 {offsets = [0, 2], sizes = [49, 1], strides = [1, 1]} : vector<49x4xf32> to vector<49x1xf32>
    %60 = vector.extract_strided_slice %43 {offsets = [2, 0], sizes = [1, 4], strides = [1, 1]} : vector<4x4xf32> to vector<1x4xf32>
    %61 = vector.broadcast %59 : vector<49x1xf32> to vector<49x4xf32>
    %62 = vector.broadcast %60 : vector<1x4xf32> to vector<49x4xf32>
    %63 = arith.mulf %61, %62 : vector<49x4xf32>
    %64 = arith.addf %58, %63 : vector<49x4xf32>
    %65 = vector.extract_strided_slice %42 {offsets = [0, 3], sizes = [49, 1], strides = [1, 1]} : vector<49x4xf32> to vector<49x1xf32>
    %66 = vector.extract_strided_slice %43 {offsets = [3, 0], sizes = [1, 4], strides = [1, 1]} : vector<4x4xf32> to vector<1x4xf32>
    %67 = vector.broadcast %65 : vector<49x1xf32> to vector<49x4xf32>
    %68 = vector.broadcast %66 : vector<1x4xf32> to vector<49x4xf32>
    %69 = arith.mulf %67, %68 : vector<49x4xf32>
    %70 = arith.addf %64, %69 : vector<49x4xf32>
    %c0_18 = arith.constant 0 : index
    %c0_19 = arith.constant 0 : index
    %71 = vector.load %arg7[%c0_18, %c0_19] : memref<1x4xf32, #tpu.memory_space<vmem>>, vector<1x4xf32>
    %c0_20 = arith.constant 0 : index
    %c0_21 = arith.constant 0 : index
    %72 = vector.load %arg8[%c0_20, %c0_21] : memref<1x4xf32, #tpu.memory_space<vmem>>, vector<1x4xf32>
    %cst_22 = arith.constant dense<0.000000e+00> : vector<49xf32>
    %73 = vector.multi_reduction <add>, %70, %cst_22 [1] : vector<49x4xf32> to vector<49xf32>
    %74 = vector.shape_cast %73 : vector<49xf32> to vector<49x1xf32>
    %cst_23 = arith.constant 4.000000e+00 : f32
    %75 = vector.broadcast %cst_23 : f32 to vector<49x1xf32>
    %76 = arith.divf %74, %75 : vector<49x1xf32>
    %77 = vector.broadcast %76 : vector<49x1xf32> to vector<49x4xf32>
    %78 = arith.subf %70, %77 : vector<49x4xf32>
    %79 = arith.mulf %78, %78 : vector<49x4xf32>
    %cst_24 = arith.constant dense<0.000000e+00> : vector<49xf32>
    %80 = vector.multi_reduction <add>, %79, %cst_24 [1] : vector<49x4xf32> to vector<49xf32>
    %81 = vector.shape_cast %80 : vector<49xf32> to vector<49x1xf32>
    %cst_25 = arith.constant 4.000000e+00 : f32
    %82 = vector.broadcast %cst_25 : f32 to vector<49x1xf32>
    %83 = arith.divf %81, %82 : vector<49x1xf32>
    %84 = vector.broadcast %76 : vector<49x1xf32> to vector<49x4xf32>
    %85 = arith.subf %70, %84 : vector<49x4xf32>
    %cst_26 = arith.constant 9.99999974E-6 : f32
    %86 = vector.broadcast %cst_26 : f32 to vector<49x1xf32>
    %87 = arith.addf %83, %86 : vector<49x1xf32>
    %88 = math.rsqrt %87 : vector<49x1xf32>
    %89 = vector.broadcast %88 : vector<49x1xf32> to vector<49x4xf32>
    %90 = arith.mulf %85, %89 : vector<49x4xf32>
    %91 = vector.broadcast %71 : vector<1x4xf32> to vector<49x4xf32>
    %92 = arith.mulf %90, %91 : vector<49x4xf32>
    %93 = vector.broadcast %72 : vector<1x4xf32> to vector<49x4xf32>
    %94 = arith.addf %92, %93 : vector<49x4xf32>
    %cst_27 = arith.constant 0.000000e+00 : f32
    %95 = vector.broadcast %cst_27 : f32 to vector<49x4xf32>
    %96 = arith.maximumf %94, %95 : vector<49x4xf32>
    %c0_28 = arith.constant 0 : index
    %c0_29 = arith.constant 0 : index
    %97 = vector.load %arg9[%c0_28, %c0_29] : memref<4x4xf32, #tpu.memory_space<vmem>>, vector<4x4xf32>
    %c0_30 = arith.constant 0 : index
    %c0_31 = arith.constant 0 : index
    %98 = vector.load %arg10[%c0_30, %c0_31] : memref<1x4xf32, #tpu.memory_space<vmem>>, vector<1x4xf32>
    %99 = vector.shape_cast %98 : vector<1x4xf32> to vector<1x4xf32>
    %100 = vector.broadcast %99 : vector<1x4xf32> to vector<49x4xf32>
    %101 = vector.extract_strided_slice %96 {offsets = [0, 0], sizes = [49, 1], strides = [1, 1]} : vector<49x4xf32> to vector<49x1xf32>
    %102 = vector.extract_strided_slice %97 {offsets = [0, 0], sizes = [1, 4], strides = [1, 1]} : vector<4x4xf32> to vector<1x4xf32>
    %103 = vector.broadcast %101 : vector<49x1xf32> to vector<49x4xf32>
    %104 = vector.broadcast %102 : vector<1x4xf32> to vector<49x4xf32>
    %105 = arith.mulf %103, %104 : vector<49x4xf32>
    %106 = arith.addf %100, %105 : vector<49x4xf32>
    %107 = vector.extract_strided_slice %96 {offsets = [0, 1], sizes = [49, 1], strides = [1, 1]} : vector<49x4xf32> to vector<49x1xf32>
    %108 = vector.extract_strided_slice %97 {offsets = [1, 0], sizes = [1, 4], strides = [1, 1]} : vector<4x4xf32> to vector<1x4xf32>
    %109 = vector.broadcast %107 : vector<49x1xf32> to vector<49x4xf32>
    %110 = vector.broadcast %108 : vector<1x4xf32> to vector<49x4xf32>
    %111 = arith.mulf %109, %110 : vector<49x4xf32>
    %112 = arith.addf %106, %111 : vector<49x4xf32>
    %113 = vector.extract_strided_slice %96 {offsets = [0, 2], sizes = [49, 1], strides = [1, 1]} : vector<49x4xf32> to vector<49x1xf32>
    %114 = vector.extract_strided_slice %97 {offsets = [2, 0], sizes = [1, 4], strides = [1, 1]} : vector<4x4xf32> to vector<1x4xf32>
    %115 = vector.broadcast %113 : vector<49x1xf32> to vector<49x4xf32>
    %116 = vector.broadcast %114 : vector<1x4xf32> to vector<49x4xf32>
    %117 = arith.mulf %115, %116 : vector<49x4xf32>
    %118 = arith.addf %112, %117 : vector<49x4xf32>
    %119 = vector.extract_strided_slice %96 {offsets = [0, 3], sizes = [49, 1], strides = [1, 1]} : vector<49x4xf32> to vector<49x1xf32>
    %120 = vector.extract_strided_slice %97 {offsets = [3, 0], sizes = [1, 4], strides = [1, 1]} : vector<4x4xf32> to vector<1x4xf32>
    %121 = vector.broadcast %119 : vector<49x1xf32> to vector<49x4xf32>
    %122 = vector.broadcast %120 : vector<1x4xf32> to vector<49x4xf32>
    %123 = arith.mulf %121, %122 : vector<49x4xf32>
    %124 = arith.addf %118, %123 : vector<49x4xf32>
    %c0_32 = arith.constant 0 : index
    %c0_33 = arith.constant 0 : index
    %125 = vector.load %arg11[%c0_32, %c0_33] : memref<1x4xf32, #tpu.memory_space<vmem>>, vector<1x4xf32>
    %c0_34 = arith.constant 0 : index
    %c0_35 = arith.constant 0 : index
    %126 = vector.load %arg12[%c0_34, %c0_35] : memref<1x4xf32, #tpu.memory_space<vmem>>, vector<1x4xf32>
    %cst_36 = arith.constant dense<0.000000e+00> : vector<49xf32>
    %127 = vector.multi_reduction <add>, %124, %cst_36 [1] : vector<49x4xf32> to vector<49xf32>
    %128 = vector.shape_cast %127 : vector<49xf32> to vector<49x1xf32>
    %cst_37 = arith.constant 4.000000e+00 : f32
    %129 = vector.broadcast %cst_37 : f32 to vector<49x1xf32>
    %130 = arith.divf %128, %129 : vector<49x1xf32>
    %131 = vector.broadcast %130 : vector<49x1xf32> to vector<49x4xf32>
    %132 = arith.subf %124, %131 : vector<49x4xf32>
    %133 = arith.mulf %132, %132 : vector<49x4xf32>
    %cst_38 = arith.constant dense<0.000000e+00> : vector<49xf32>
    %134 = vector.multi_reduction <add>, %133, %cst_38 [1] : vector<49x4xf32> to vector<49xf32>
    %135 = vector.shape_cast %134 : vector<49xf32> to vector<49x1xf32>
    %cst_39 = arith.constant 4.000000e+00 : f32
    %136 = vector.broadcast %cst_39 : f32 to vector<49x1xf32>
    %137 = arith.divf %135, %136 : vector<49x1xf32>
    %138 = vector.broadcast %130 : vector<49x1xf32> to vector<49x4xf32>
    %139 = arith.subf %124, %138 : vector<49x4xf32>
    %cst_40 = arith.constant 9.99999974E-6 : f32
    %140 = vector.broadcast %cst_40 : f32 to vector<49x1xf32>
    %141 = arith.addf %137, %140 : vector<49x1xf32>
    %142 = math.rsqrt %141 : vector<49x1xf32>
    %143 = vector.broadcast %142 : vector<49x1xf32> to vector<49x4xf32>
    %144 = arith.mulf %139, %143 : vector<49x4xf32>
    %145 = vector.broadcast %125 : vector<1x4xf32> to vector<49x4xf32>
    %146 = arith.mulf %144, %145 : vector<49x4xf32>
    %147 = vector.broadcast %126 : vector<1x4xf32> to vector<49x4xf32>
    %148 = arith.addf %146, %147 : vector<49x4xf32>
    %cst_41 = arith.constant 0.000000e+00 : f32
    %149 = vector.broadcast %cst_41 : f32 to vector<49x4xf32>
    %150 = arith.maximumf %148, %149 : vector<49x4xf32>
    %c0_42 = arith.constant 0 : index
    %c0_43 = arith.constant 0 : index
    %151 = vector.load %arg13[%c0_42, %c0_43] : memref<4x4xf32, #tpu.memory_space<vmem>>, vector<4x4xf32>
    %c0_44 = arith.constant 0 : index
    %c0_45 = arith.constant 0 : index
    %152 = vector.load %arg14[%c0_44, %c0_45] : memref<1x4xf32, #tpu.memory_space<vmem>>, vector<1x4xf32>
    %153 = vector.shape_cast %152 : vector<1x4xf32> to vector<1x4xf32>
    %154 = vector.broadcast %153 : vector<1x4xf32> to vector<49x4xf32>
    %155 = vector.extract_strided_slice %150 {offsets = [0, 0], sizes = [49, 1], strides = [1, 1]} : vector<49x4xf32> to vector<49x1xf32>
    %156 = vector.extract_strided_slice %151 {offsets = [0, 0], sizes = [1, 4], strides = [1, 1]} : vector<4x4xf32> to vector<1x4xf32>
    %157 = vector.broadcast %155 : vector<49x1xf32> to vector<49x4xf32>
    %158 = vector.broadcast %156 : vector<1x4xf32> to vector<49x4xf32>
    %159 = arith.mulf %157, %158 : vector<49x4xf32>
    %160 = arith.addf %154, %159 : vector<49x4xf32>
    %161 = vector.extract_strided_slice %150 {offsets = [0, 1], sizes = [49, 1], strides = [1, 1]} : vector<49x4xf32> to vector<49x1xf32>
    %162 = vector.extract_strided_slice %151 {offsets = [1, 0], sizes = [1, 4], strides = [1, 1]} : vector<4x4xf32> to vector<1x4xf32>
    %163 = vector.broadcast %161 : vector<49x1xf32> to vector<49x4xf32>
    %164 = vector.broadcast %162 : vector<1x4xf32> to vector<49x4xf32>
    %165 = arith.mulf %163, %164 : vector<49x4xf32>
    %166 = arith.addf %160, %165 : vector<49x4xf32>
    %167 = vector.extract_strided_slice %150 {offsets = [0, 2], sizes = [49, 1], strides = [1, 1]} : vector<49x4xf32> to vector<49x1xf32>
    %168 = vector.extract_strided_slice %151 {offsets = [2, 0], sizes = [1, 4], strides = [1, 1]} : vector<4x4xf32> to vector<1x4xf32>
    %169 = vector.broadcast %167 : vector<49x1xf32> to vector<49x4xf32>
    %170 = vector.broadcast %168 : vector<1x4xf32> to vector<49x4xf32>
    %171 = arith.mulf %169, %170 : vector<49x4xf32>
    %172 = arith.addf %166, %171 : vector<49x4xf32>
    %173 = vector.extract_strided_slice %150 {offsets = [0, 3], sizes = [49, 1], strides = [1, 1]} : vector<49x4xf32> to vector<49x1xf32>
    %174 = vector.extract_strided_slice %151 {offsets = [3, 0], sizes = [1, 4], strides = [1, 1]} : vector<4x4xf32> to vector<1x4xf32>
    %175 = vector.broadcast %173 : vector<49x1xf32> to vector<49x4xf32>
    %176 = vector.broadcast %174 : vector<1x4xf32> to vector<49x4xf32>
    %177 = arith.mulf %175, %176 : vector<49x4xf32>
    %178 = arith.addf %172, %177 : vector<49x4xf32>
    %c0_46 = arith.constant 0 : index
    %c0_47 = arith.constant 0 : index
    %179 = vector.load %arg15[%c0_46, %c0_47] : memref<49x4xf32, #tpu.memory_space<vmem>>, vector<49x4xf32>
    tpu.vector_store %arg15[%c0_46, %c0_47], %178 {strides = array<i32>} : memref<49x4xf32, #tpu.memory_space<vmem>>, vector<49x4xf32>,
    return
  }
}

</mosaic_0001>

<llo_original>
// kernel: tpu_custom_call.1
$region0: #{tpu_custom_call.1}
  #allocation0 [shape = 'u32[]', space=smem, size = 0x4, offset = 0x4, fixed_abs, tag = 'smem constant byte address 0x4 - core index']
  #allocation1 [shape = 'u32[72,128]{1,0:T(1,128)}', space=vmem, size = 0x9000, scoped, tag = 'internal scratch']
  %s0 = inlined_call_operand.vmem [shape: f32[49,2], index: 0, kind: input, shape index: {}]
  %s1 = inlined_call_operand.vmem [shape: f32[2,4], index: 1, kind: input, shape index: {}]
  %s2 = inlined_call_operand.vmem [shape: f32[1,4], index: 2, kind: input, shape index: {}]
  %s3 = inlined_call_operand.vmem [shape: f32[1,4], index: 3, kind: input, shape index: {}]
  %s4 = inlined_call_operand.vmem [shape: f32[1,4], index: 4, kind: input, shape index: {}]
  %s5 = inlined_call_operand.vmem [shape: f32[4,4], index: 5, kind: input, shape index: {}]
  %s6 = inlined_call_operand.vmem [shape: f32[1,4], index: 6, kind: input, shape index: {}]
  %s7 = inlined_call_operand.vmem [shape: f32[1,4], index: 7, kind: input, shape index: {}]
  %s8 = inlined_call_operand.vmem [shape: f32[1,4], index: 8, kind: input, shape index: {}]
  %s9 = inlined_call_operand.vmem [shape: f32[4,4], index: 9, kind: input, shape index: {}]
  %s10 = inlined_call_operand.vmem [shape: f32[1,4], index: 10, kind: input, shape index: {}]
  %s11 = inlined_call_operand.vmem [shape: f32[1,4], index: 11, kind: input, shape index: {}]
  %s12 = inlined_call_operand.vmem [shape: f32[1,4], index: 12, kind: input, shape index: {}]
  %s13 = inlined_call_operand.vmem [shape: f32[4,4], index: 13, kind: input, shape index: {}]
  %s14 = inlined_call_operand.vmem [shape: f32[1,4], index: 14, kind: input, shape index: {}]
  %s15 = inlined_call_operand.vmem [shape: f32[49,4], index: 15, kind: output, shape index: {}]
  %s16 = sld [smem:[#allocation0]]
  $region70: #{tpu_custom_call.1} parent=0
    _
  %s18 = ssub.s32 1, %s16
  %s19 = scalar_select 0, %s18, %s16
  // Predicated region
  $region2: #{tpu_custom_call.1} parent=0 // pred_check
    _
  $region3: #{tpu_custom_call.1} parent=0 // pred_check_branch
    %21 = sbr.rel (0) target = $region5
  $region4: #{tpu_custom_call.1} parent=0 // pred_region
    _
  $region5: #{tpu_custom_call.1} parent=0 // pred_fallthru
    _
  // Predicated region
  $region6: #{tpu_custom_call.1} parent=0 // pred_check
    _
  $region7: #{tpu_custom_call.1} parent=0 // pred_check_branch
    %23 = sbr.rel (0) target = $region9
  $region8: #{tpu_custom_call.1} parent=0 // pred_region
    _
  $region9: #{tpu_custom_call.1} parent=0 // pred_fallthru
    _
  // Predicated region
  $region10: #{tpu_custom_call.1} parent=0 // pred_check
    _
  $region11: #{tpu_custom_call.1} parent=0 // pred_check_branch
    %25 = sbr.rel (0) target = $region13
  $region12: #{tpu_custom_call.1} parent=0 // pred_region
    _
  $region13: #{tpu_custom_call.1} parent=0 // pred_fallthru
    _
  // Predicated region
  $region14: #{tpu_custom_call.1} parent=0 // pred_check
    _
  $region15: #{tpu_custom_call.1} parent=0 // pred_check_branch
    %27 = sbr.rel (0) target = $region17
  $region16: #{tpu_custom_call.1} parent=0 // pred_region
    _
  $region17: #{tpu_custom_call.1} parent=0 // pred_fallthru
    _
  // Predicated region
  $region18: #{tpu_custom_call.1} parent=0 // pred_check
    _
  $region19: #{tpu_custom_call.1} parent=0 // pred_check_branch
    %29 = sbr.rel (0) target = $region21
  $region20: #{tpu_custom_call.1} parent=0 // pred_region
    _
  $region21: #{tpu_custom_call.1} parent=0 // pred_fallthru
    _
  // Predicated region
  $region22: #{tpu_custom_call.1} parent=0 // pred_check
    _
  $region23: #{tpu_custom_call.1} parent=0 // pred_check_branch
    %31 = sbr.rel (0) target = $region25
  $region24: #{tpu_custom_call.1} parent=0 // pred_region
    _
  $region25: #{tpu_custom_call.1} parent=0 // pred_fallthru
    _
  // Predicated region
  $region26: #{tpu_custom_call.1} parent=0 // pred_check
    _
  $region27: #{tpu_custom_call.1} parent=0 // pred_check_branch
    %33 = sbr.rel (0) target = $region29
  $region28: #{tpu_custom_call.1} parent=0 // pred_region
    _
  $region29: #{tpu_custom_call.1} parent=0 // pred_fallthru
    _
  // Predicated region
  $region30: #{tpu_custom_call.1} parent=0 // pred_check
    _
  $region31: #{tpu_custom_call.1} parent=0 // pred_check_branch
    %35 = sbr.rel (0) target = $region33
  $region32: #{tpu_custom_call.1} parent=0 // pred_region
    _
  $region33: #{tpu_custom_call.1} parent=0 // pred_fallthru
    _
  // Predicated region
  $region34: #{tpu_custom_call.1} parent=0 // pred_check
    _
  $region35: #{tpu_custom_call.1} parent=0 // pred_check_branch
    %37 = sbr.rel (0) target = $region37
  $region36: #{tpu_custom_call.1} parent=0 // pred_region
    _
  $region37: #{tpu_custom_call.1} parent=0 // pred_fallthru
    _
  // Predicated region
  $region38: #{tpu_custom_call.1} parent=0 // pred_check
    _
  $region39: #{tpu_custom_call.1} parent=0 // pred_check_branch
    %39 = sbr.rel (0) target = $region41
  $region40: #{tpu_custom_call.1} parent=0 // pred_region
    _
  $region41: #{tpu_custom_call.1} parent=0 // pred_fallthru
    _
  // Predicated region
  $region42: #{tpu_custom_call.1} parent=0 // pred_check
    _
  $region43: #{tpu_custom_call.1} parent=0 // pred_check_branch
    %41 = sbr.rel (0) target = $region45
  $region44: #{tpu_custom_call.1} parent=0 // pred_region
    _
  $region45: #{tpu_custom_call.1} parent=0 // pred_fallthru
    _
  // Predicated region
  $region46: #{tpu_custom_call.1} parent=0 // pred_check
    _
  $region47: #{tpu_custom_call.1} parent=0 // pred_check_branch
    %43 = sbr.rel (0) target = $region49
  $region48: #{tpu_custom_call.1} parent=0 // pred_region
    _
  $region49: #{tpu_custom_call.1} parent=0 // pred_fallthru
    _
  // Predicated region
  $region50: #{tpu_custom_call.1} parent=0 // pred_check
    _
  $region51: #{tpu_custom_call.1} parent=0 // pred_check_branch
    %45 = sbr.rel (0) target = $region53
  $region52: #{tpu_custom_call.1} parent=0 // pred_region
    _
  $region53: #{tpu_custom_call.1} parent=0 // pred_fallthru
    _
  // Predicated region
  $region54: #{tpu_custom_call.1} parent=0 // pred_check
    _
  $region55: #{tpu_custom_call.1} parent=0 // pred_check_branch
    %47 = sbr.rel (0) target = $region57
  $region56: #{tpu_custom_call.1} parent=0 // pred_region
    _
  $region57: #{tpu_custom_call.1} parent=0 // pred_fallthru
    _
  // Predicated region
  $region58: #{tpu_custom_call.1} parent=0 // pred_check
    _
  $region59: #{tpu_custom_call.1} parent=0 // pred_check_branch
    %49 = sbr.rel (0) target = $region61
  $region60: #{tpu_custom_call.1} parent=0 // pred_region
    _
  $region61: #{tpu_custom_call.1} parent=0 // pred_fallthru
    _
  %v50 = vld [vmem:[%s0] sm:$0xff]
  %v51 = vld [vmem:[%s0 + $0x8] sm:$0xff]
  %v52 = vld [vmem:[%s0 + $0x10] sm:$0xff]
  %v53 = vld [vmem:[%s0 + $0x18] sm:$0xff]
  %v54 = vld [vmem:[%s0 + $0x20] sm:$0xff]
  %v55 = vld [vmem:[%s0 + $0x28] sm:$0xff]
  %v56 = vld [vmem:[%s0 + $0x30] sm:$0x1]
  %v57 = vld [vmem:[%s1] sm:$0x3]
  %v58 = vld [vmem:[%s2] sm:$0x1]
  %v60 = vperm.slane %v58, 0
  %63 = vset.pattern.permute.xlu0 0
  %64 = vperm.xlu0 %63, %v50
  %v65 = vpop.permute.xlu0 %64
  %68 = vset.pattern.permute.xlu0 0
  %69 = vperm.xlu0 %68, %v51
  %v70 = vpop.permute.xlu0 %69
  %73 = vset.pattern.permute.xlu0 0
  %74 = vperm.xlu0 %73, %v52
  %v75 = vpop.permute.xlu0 %74
  %78 = vset.pattern.permute.xlu0 0
  %79 = vperm.xlu0 %78, %v53
  %v80 = vpop.permute.xlu0 %79
  %83 = vset.pattern.permute.xlu0 0
  %84 = vperm.xlu0 %83, %v54
  %v85 = vpop.permute.xlu0 %84
  %88 = vset.pattern.permute.xlu0 0
  %89 = vperm.xlu0 %88, %v55
  %v90 = vpop.permute.xlu0 %89
  %93 = vset.pattern.permute.xlu0 0
  %94 = vperm.xlu0 %93, %v56
  %v95 = vpop.permute.xlu0 %94
  %v97 = vperm.slane %v57, 0
  %v98 = vmul.f32 %v65, %v97
  %v99 = vmul.f32 %v70, %v97
  %v100 = vmul.f32 %v75, %v97
  %v101 = vmul.f32 %v80, %v97
  %v102 = vmul.f32 %v85, %v97
  %v103 = vmul.f32 %v90, %v97
  %v104 = vmul.f32 %v95, %v97
  %v105 = vadd.f32 %v60, %v98
  %v106 = vadd.f32 %v60, %v99
  %v107 = vadd.f32 %v60, %v100
  %v108 = vadd.f32 %v60, %v101
  %v109 = vadd.f32 %v60, %v102
  %v110 = vadd.f32 %v60, %v103
  %v111 = vadd.f32 %v60, %v104
  %112 = vset.pattern.permute.xlu0 1
  %113 = vperm.xlu0 %112, %v50
  %v114 = vpop.permute.xlu0 %113
  %116 = vset.pattern.permute.xlu0 1
  %117 = vperm.xlu0 %116, %v51
  %v118 = vpop.permute.xlu0 %117
  %120 = vset.pattern.permute.xlu0 1
  %121 = vperm.xlu0 %120, %v52
  %v122 = vpop.permute.xlu0 %121
  %124 = vset.pattern.permute.xlu0 1
  %125 = vperm.xlu0 %124, %v53
  %v126 = vpop.permute.xlu0 %125
  %128 = vset.pattern.permute.xlu0 1
  %129 = vperm.xlu0 %128, %v54
  %v130 = vpop.permute.xlu0 %129
  %132 = vset.pattern.permute.xlu0 1
  %133 = vperm.xlu0 %132, %v55
  %v134 = vpop.permute.xlu0 %133
  %136 = vset.pattern.permute.xlu0 1
  %137 = vperm.xlu0 %136, %v56
  %v138 = vpop.permute.xlu0 %137
  %v140 = vperm.slane %v57, 1
  %v141 = vmul.f32 %v114, %v140
  %v142 = vmul.f32 %v118, %v140
  %v143 = vmul.f32 %v122, %v140
  %v144 = vmul.f32 %v126, %v140
  %v145 = vmul.f32 %v130, %v140
  %v146 = vmul.f32 %v134, %v140
  %v147 = vmul.f32 %v138, %v140
  %v148 = vadd.f32 %v105, %v141
  %v149 = vadd.f32 %v106, %v142
  %v150 = vadd.f32 %v107, %v143
  %v151 = vadd.f32 %v108, %v144
  %v152 = vadd.f32 %v109, %v145
  %v153 = vadd.f32 %v110, %v146
  %v154 = vadd.f32 %v111, %v147
  %v155 = vld [vmem:[%s3] sm:$0x1]
  %v156 = vld [vmem:[%s4] sm:$0x1]
  %vm157 = vcmask 31744
  %v158 = vsel %vm157, %v148, 0.0
  %159 = vadd.xlane.f32.xlu0 %v158
  %v160 = vpop.xlane.xlu0 %159
  %v161 = vsel %vm157, %v149, 0.0
  %162 = vadd.xlane.f32.xlu0 %v161
  %v163 = vpop.xlane.xlu0 %162
  %v164 = vsel %vm157, %v150, 0.0
  %165 = vadd.xlane.f32.xlu0 %v164
  %v166 = vpop.xlane.xlu0 %165
  %v167 = vsel %vm157, %v151, 0.0
  %168 = vadd.xlane.f32.xlu0 %v167
  %v169 = vpop.xlane.xlu0 %168
  %v170 = vsel %vm157, %v152, 0.0
  %171 = vadd.xlane.f32.xlu0 %v170
  %v172 = vpop.xlane.xlu0 %171
  %v173 = vsel %vm157, %v153, 0.0
  %174 = vadd.xlane.f32.xlu0 %v173
  %v175 = vpop.xlane.xlu0 %174
  %vm176 = vcmask 24576
  %v177 = vsel %vm176, %v154, 0.0
  %178 = vadd.xlane.f32.xlu0 %v177
  %v179 = vpop.xlane.xlu0 %178
  %v180 = vrcp.pop 4.0
  %v181 = vmul.f32 4.0, %v180
  %v182 = vsub.f32 1.0, %v181
  %v183 = vmul.f32 %v180, %v182
  %v184 = vadd.f32 %v180, %v183
  %vm185 = vweird.f32 %v180
  %v186 = vsel %vm185, %v180, %v184
  %v187 = vmul.f32 %v160, %v186
  %v188 = vmul.f32 %v163, %v186
  %v189 = vmul.f32 %v166, %v186
  %v190 = vmul.f32 %v169, %v186
  %v191 = vmul.f32 %v172, %v186
  %v192 = vmul.f32 %v175, %v186
  %v193 = vmul.f32 %v179, %v186
  %v194 = vsub.f32 %v148, %v187
  %v195 = vsub.f32 %v149, %v188
  %v196 = vsub.f32 %v150, %v189
  %v197 = vsub.f32 %v151, %v190
  %v198 = vsub.f32 %v152, %v191
  %v199 = vsub.f32 %v153, %v192
  %v200 = vsub.f32 %v154, %v193
  %v201 = vmul.f32 %v194, %v194
  %v202 = vmul.f32 %v195, %v195
  %v203 = vmul.f32 %v196, %v196
  %v204 = vmul.f32 %v197, %v197
  %v205 = vmul.f32 %v198, %v198
  %v206 = vmul.f32 %v199, %v199
  %v207 = vmul.f32 %v200, %v200
  %v208 = vsel %vm157, %v201, 0.0
  %209 = vadd.xlane.f32.xlu0 %v208
  %v210 = vpop.xlane.xlu0 %209
  %v211 = vsel %vm157, %v202, 0.0
  %212 = vadd.xlane.f32.xlu0 %v211
  %v213 = vpop.xlane.xlu0 %212
  %v214 = vsel %vm157, %v203, 0.0
  %215 = vadd.xlane.f32.xlu0 %v214
  %v216 = vpop.xlane.xlu0 %215
  %v217 = vsel %vm157, %v204, 0.0
  %218 = vadd.xlane.f32.xlu0 %v217
  %v219 = vpop.xlane.xlu0 %218
  %v220 = vsel %vm157, %v205, 0.0
  %221 = vadd.xlane.f32.xlu0 %v220
  %v222 = vpop.xlane.xlu0 %221
  %v223 = vsel %vm157, %v206, 0.0
  %224 = vadd.xlane.f32.xlu0 %v223
  %v225 = vpop.xlane.xlu0 %224
  %v226 = vsel %vm176, %v207, 0.0
  %227 = vadd.xlane.f32.xlu0 %v226
  %v228 = vpop.xlane.xlu0 %227
  %v229 = vmul.f32 %v210, %v186
  %v230 = vmul.f32 %v213, %v186
  %v231 = vmul.f32 %v216, %v186
  %v232 = vmul.f32 %v219, %v186
  %v233 = vmul.f32 %v222, %v186
  %v234 = vmul.f32 %v225, %v186
  %v235 = vmul.f32 %v228, %v186
  %v236 = vadd.f32 %v229, 1e-05
  %v237 = vadd.f32 %v230, 1e-05
  %v238 = vadd.f32 %v231, 1e-05
  %v239 = vadd.f32 %v232, 1e-05
  %v240 = vadd.f32 %v233, 1e-05
  %v241 = vadd.f32 %v234, 1e-05
  %v242 = vadd.f32 %v235, 1e-05
  %v243 = vrsqrt.pop %v236
  %v244 = vmul.f32 %v243, %v236
  %v245 = vmul.f32 %v244, %v243
  %v246 = vmul.f32 0.5, %v245
  %v247 = vsub.f32 1.5, %v246
  %v248 = vmul.f32 %v243, %v247
  %vm249 = vweird.f32 %v236
  %vm250 = vweird.f32 %v243
  %vm251 = vmor %vm249, %vm250
  %v252 = vsel %vm251, %v243, %v248
  %v253 = vrsqrt.pop %v237
  %v254 = vmul.f32 %v253, %v237
  %v255 = vmul.f32 %v254, %v253
  %v256 = vmul.f32 0.5, %v255
  %v257 = vsub.f32 1.5, %v256
  %v258 = vmul.f32 %v253, %v257
  %vm259 = vweird.f32 %v237
  %vm260 = vweird.f32 %v253
  %vm261 = vmor %vm259, %vm260
  %v262 = vsel %vm261, %v253, %v258
  %v263 = vrsqrt.pop %v238
  %v264 = vmul.f32 %v263, %v238
  %v265 = vmul.f32 %v264, %v263
  %v266 = vmul.f32 0.5, %v265
  %v267 = vsub.f32 1.5, %v266
  %v268 = vmul.f32 %v263, %v267
  %vm269 = vweird.f32 %v238
  %vm270 = vweird.f32 %v263
  %vm271 = vmor %vm269, %vm270
  %v272 = vsel %vm271, %v263, %v268
  %v273 = vrsqrt.pop %v239
  %v274 = vmul.f32 %v273, %v239
  %v275 = vmul.f32 %v274, %v273
  %v276 = vmul.f32 0.5, %v275
  %v277 = vsub.f32 1.5, %v276
  %v278 = vmul.f32 %v273, %v277
  %vm279 = vweird.f32 %v239
  %vm280 = vweird.f32 %v273
  %vm281 = vmor %vm279, %vm280
  %v282 = vsel %vm281, %v273, %v278
  %v283 = vrsqrt.pop %v240
  %v284 = vmul.f32 %v283, %v240
  %v285 = vmul.f32 %v284, %v283
  %v286 = vmul.f32 0.5, %v285
  %v287 = vsub.f32 1.5, %v286
  %v288 = vmul.f32 %v283, %v287
  %vm289 = vweird.f32 %v240
  %vm290 = vweird.f32 %v283
  %vm291 = vmor %vm289, %vm290
  %v292 = vsel %vm291, %v283, %v288
  %v293 = vrsqrt.pop %v241
  %v294 = vmul.f32 %v293, %v241
  %v295 = vmul.f32 %v294, %v293
  %v296 = vmul.f32 0.5, %v295
  %v297 = vsub.f32 1.5, %v296
  %v298 = vmul.f32 %v293, %v297
  %vm299 = vweird.f32 %v241
  %vm300 = vweird.f32 %v293
  %vm301 = vmor %vm299, %vm300
  %v302 = vsel %vm301, %v293, %v298
  %v303 = vrsqrt.pop %v242
  %v304 = vmul.f32 %v303, %v242
  %v305 = vmul.f32 %v304, %v303
  %v306 = vmul.f32 0.5, %v305
  %v307 = vsub.f32 1.5, %v306
  %v308 = vmul.f32 %v303, %v307
  %vm309 = vweird.f32 %v242
  %vm310 = vweird.f32 %v303
  %vm311 = vmor %vm309, %vm310
  %v312 = vsel %vm311, %v303, %v308
  %v313 = vmul.f32 %v194, %v252
  %v314 = vmul.f32 %v195, %v262
  %v315 = vmul.f32 %v196, %v272
  %v316 = vmul.f32 %v197, %v282
  %v317 = vmul.f32 %v198, %v292
  %v318 = vmul.f32 %v199, %v302
  %v319 = vmul.f32 %v200, %v312
  %v321 = vperm.slane %v155, 0
  %v323 = vmul.f32 %v313, %v321
  %v324 = vmul.f32 %v314, %v321
  %v325 = vmul.f32 %v315, %v321
  %v326 = vmul.f32 %v316, %v321
  %v327 = vmul.f32 %v317, %v321
  %v328 = vmul.f32 %v318, %v321
  %v329 = vmul.f32 %v319, %v321
  %v331 = vperm.slane %v156, 0
  %v333 = vadd.f32 %v323, %v331
  %v334 = vadd.f32 %v324, %v331
  %v335 = vadd.f32 %v325, %v331
  %v336 = vadd.f32 %v326, %v331
  %v337 = vadd.f32 %v327, %v331
  %v338 = vadd.f32 %v328, %v331
  %v339 = vadd.f32 %v329, %v331
  %v340 = vmax.f32 %v333, 0.0
  %v341 = vmax.f32 %v334, 0.0
  %v342 = vmax.f32 %v335, 0.0
  %v343 = vmax.f32 %v336, 0.0
  %v344 = vmax.f32 %v337, 0.0
  %v345 = vmax.f32 %v338, 0.0
  %v346 = vmax.f32 %v339, 0.0
  %v347 = vld [vmem:[%s5] sm:$0xf]
  %v348 = vld [vmem:[%s6] sm:$0x1]
  %v350 = vperm.slane %v348, 0
  %353 = vset.pattern.permute.xlu0 0
  %354 = vperm.xlu0 %353, %v340
  %v355 = vpop.permute.xlu0 %354
  %358 = vset.pattern.permute.xlu0 0
  %359 = vperm.xlu0 %358, %v341
  %v360 = vpop.permute.xlu0 %359
  %363 = vset.pattern.permute.xlu0 0
  %364 = vperm.xlu0 %363, %v342
  %v365 = vpop.permute.xlu0 %364
  %368 = vset.pattern.permute.xlu0 0
  %369 = vperm.xlu0 %368, %v343
  %v370 = vpop.permute.xlu0 %369
  %373 = vset.pattern.permute.xlu0 0
  %374 = vperm.xlu0 %373, %v344
  %v375 = vpop.permute.xlu0 %374
  %378 = vset.pattern.permute.xlu0 0
  %379 = vperm.xlu0 %378, %v345
  %v380 = vpop.permute.xlu0 %379
  %383 = vset.pattern.permute.xlu0 0
  %384 = vperm.xlu0 %383, %v346
  %v385 = vpop.permute.xlu0 %384
  %v387 = vperm.slane %v347, 0
  %v388 = vmul.f32 %v355, %v387
  %v389 = vmul.f32 %v360, %v387
  %v390 = vmul.f32 %v365, %v387
  %v391 = vmul.f32 %v370, %v387
  %v392 = vmul.f32 %v375, %v387
  %v393 = vmul.f32 %v380, %v387
  %v394 = vmul.f32 %v385, %v387
  %v395 = vadd.f32 %v350, %v388
  %v396 = vadd.f32 %v350, %v389
  %v397 = vadd.f32 %v350, %v390
  %v398 = vadd.f32 %v350, %v391
  %v399 = vadd.f32 %v350, %v392
  %v400 = vadd.f32 %v350, %v393
  %v401 = vadd.f32 %v350, %v394
  %402 = vset.pattern.permute.xlu0 1
  %403 = vperm.xlu0 %402, %v340
  %v404 = vpop.permute.xlu0 %403
  %406 = vset.pattern.permute.xlu0 1
  %407 = vperm.xlu0 %406, %v341
  %v408 = vpop.permute.xlu0 %407
  %410 = vset.pattern.permute.xlu0 1
  %411 = vperm.xlu0 %410, %v342
  %v412 = vpop.permute.xlu0 %411
  %414 = vset.pattern.permute.xlu0 1
  %415 = vperm.xlu0 %414, %v343
  %v416 = vpop.permute.xlu0 %415
  %418 = vset.pattern.permute.xlu0 1
  %419 = vperm.xlu0 %418, %v344
  %v420 = vpop.permute.xlu0 %419
  %422 = vset.pattern.permute.xlu0 1
  %423 = vperm.xlu0 %422, %v345
  %v424 = vpop.permute.xlu0 %423
  %426 = vset.pattern.permute.xlu0 1
  %427 = vperm.xlu0 %426, %v346
  %v428 = vpop.permute.xlu0 %427
  %v430 = vperm.slane %v347, 1
  %v431 = vmul.f32 %v404, %v430
  %v432 = vmul.f32 %v408, %v430
  %v433 = vmul.f32 %v412, %v430
  %v434 = vmul.f32 %v416, %v430
  %v435 = vmul.f32 %v420, %v430
  %v436 = vmul.f32 %v424, %v430
  %v437 = vmul.f32 %v428, %v430
  %v438 = vadd.f32 %v395, %v431
  %v439 = vadd.f32 %v396, %v432
  %v440 = vadd.f32 %v397, %v433
  %v441 = vadd.f32 %v398, %v434
  %v442 = vadd.f32 %v399, %v435
  %v443 = vadd.f32 %v400, %v436
  %v444 = vadd.f32 %v401, %v437
  %445 = vset.pattern.permute.xlu0 2
  %446 = vperm.xlu0 %445, %v340
  %v447 = vpop.permute.xlu0 %446
  %449 = vset.pattern.permute.xlu0 2
  %450 = vperm.xlu0 %449, %v341
  %v451 = vpop.permute.xlu0 %450
  %453 = vset.pattern.permute.xlu0 2
  %454 = vperm.xlu0 %453, %v342
  %v455 = vpop.permute.xlu0 %454
  %457 = vset.pattern.permute.xlu0 2
  %458 = vperm.xlu0 %457, %v343
  %v459 = vpop.permute.xlu0 %458
  %461 = vset.pattern.permute.xlu0 2
  %462 = vperm.xlu0 %461, %v344
  %v463 = vpop.permute.xlu0 %462
  %465 = vset.pattern.permute.xlu0 2
  %466 = vperm.xlu0 %465, %v345
  %v467 = vpop.permute.xlu0 %466
  %469 = vset.pattern.permute.xlu0 2
  %470 = vperm.xlu0 %469, %v346
  %v471 = vpop.permute.xlu0 %470
  %v473 = vperm.slane %v347, 2
  %v474 = vmul.f32 %v447, %v473
  %v475 = vmul.f32 %v451, %v473
  %v476 = vmul.f32 %v455, %v473
  %v477 = vmul.f32 %v459, %v473
  %v478 = vmul.f32 %v463, %v473
  %v479 = vmul.f32 %v467, %v473
  %v480 = vmul.f32 %v471, %v473
  %v481 = vadd.f32 %v438, %v474
  %v482 = vadd.f32 %v439, %v475
  %v483 = vadd.f32 %v440, %v476
  %v484 = vadd.f32 %v441, %v477
  %v485 = vadd.f32 %v442, %v478
  %v486 = vadd.f32 %v443, %v479
  %v487 = vadd.f32 %v444, %v480
  %488 = vset.pattern.permute.xlu0 3
  %489 = vperm.xlu0 %488, %v340
  %v490 = vpop.permute.xlu0 %489
  %492 = vset.pattern.permute.xlu0 3
  %493 = vperm.xlu0 %492, %v341
  %v494 = vpop.permute.xlu0 %493
  %496 = vset.pattern.permute.xlu0 3
  %497 = vperm.xlu0 %496, %v342
  %v498 = vpop.permute.xlu0 %497
  %500 = vset.pattern.permute.xlu0 3
  %501 = vperm.xlu0 %500, %v343
  %v502 = vpop.permute.xlu0 %501
  %504 = vset.pattern.permute.xlu0 3
  %505 = vperm.xlu0 %504, %v344
  %v506 = vpop.permute.xlu0 %505
  %508 = vset.pattern.permute.xlu0 3
  %509 = vperm.xlu0 %508, %v345
  %v510 = vpop.permute.xlu0 %509
  %512 = vset.pattern.permute.xlu0 3
  %513 = vperm.xlu0 %512, %v346
  %v514 = vpop.permute.xlu0 %513
  %v516 = vperm.slane %v347, 3
  %v517 = vmul.f32 %v490, %v516
  %v518 = vmul.f32 %v494, %v516
  %v519 = vmul.f32 %v498, %v516
  %v520 = vmul.f32 %v502, %v516
  %v521 = vmul.f32 %v506, %v516
  %v522 = vmul.f32 %v510, %v516
  %v523 = vmul.f32 %v514, %v516
  %v524 = vadd.f32 %v481, %v517
  %v525 = vadd.f32 %v482, %v518
  %v526 = vadd.f32 %v483, %v519
  %v527 = vadd.f32 %v484, %v520
  %v528 = vadd.f32 %v485, %v521
  %v529 = vadd.f32 %v486, %v522
  %v530 = vadd.f32 %v487, %v523
  %v531 = vld [vmem:[%s7] sm:$0x1]
  %v532 = vld [vmem:[%s8] sm:$0x1]
  %v533 = vsel %vm157, %v524, 0.0
  %534 = vadd.xlane.f32.xlu0 %v533
  %v535 = vpop.xlane.xlu0 %534
  %v536 = vsel %vm157, %v525, 0.0
  %537 = vadd.xlane.f32.xlu0 %v536
  %v538 = vpop.xlane.xlu0 %537
  %v539 = vsel %vm157, %v526, 0.0
  %540 = vadd.xlane.f32.xlu0 %v539
  %v541 = vpop.xlane.xlu0 %540
  %v542 = vsel %vm157, %v527, 0.0
  %543 = vadd.xlane.f32.xlu0 %v542
  %v544 = vpop.xlane.xlu0 %543
  %v545 = vsel %vm157, %v528, 0.0
  %546 = vadd.xlane.f32.xlu0 %v545
  %v547 = vpop.xlane.xlu0 %546
  %v548 = vsel %vm157, %v529, 0.0
  %549 = vadd.xlane.f32.xlu0 %v548
  %v550 = vpop.xlane.xlu0 %549
  %v551 = vsel %vm176, %v530, 0.0
  %552 = vadd.xlane.f32.xlu0 %v551
  %v553 = vpop.xlane.xlu0 %552
  %v554 = vmul.f32 %v535, %v186
  %v555 = vmul.f32 %v538, %v186
  %v556 = vmul.f32 %v541, %v186
  %v557 = vmul.f32 %v544, %v186
  %v558 = vmul.f32 %v547, %v186
  %v559 = vmul.f32 %v550, %v186
  %v560 = vmul.f32 %v553, %v186
  %v561 = vsub.f32 %v524, %v554
  %v562 = vsub.f32 %v525, %v555
  %v563 = vsub.f32 %v526, %v556
  %v564 = vsub.f32 %v527, %v557
  %v565 = vsub.f32 %v528, %v558
  %v566 = vsub.f32 %v529, %v559
  %v567 = vsub.f32 %v530, %v560
  %v568 = vmul.f32 %v561, %v561
  %v569 = vmul.f32 %v562, %v562
  %v570 = vmul.f32 %v563, %v563
  %v571 = vmul.f32 %v564, %v564
  %v572 = vmul.f32 %v565, %v565
  %v573 = vmul.f32 %v566, %v566
  %v574 = vmul.f32 %v567, %v567
  %v575 = vsel %vm157, %v568, 0.0
  %576 = vadd.xlane.f32.xlu0 %v575
  %v577 = vpop.xlane.xlu0 %576
  %v578 = vsel %vm157, %v569, 0.0
  %579 = vadd.xlane.f32.xlu0 %v578
  %v580 = vpop.xlane.xlu0 %579
  %v581 = vsel %vm157, %v570, 0.0
  %582 = vadd.xlane.f32.xlu0 %v581
  %v583 = vpop.xlane.xlu0 %582
  %v584 = vsel %vm157, %v571, 0.0
  %585 = vadd.xlane.f32.xlu0 %v584
  %v586 = vpop.xlane.xlu0 %585
  %v587 = vsel %vm157, %v572, 0.0
  %588 = vadd.xlane.f32.xlu0 %v587
  %v589 = vpop.xlane.xlu0 %588
  %v590 = vsel %vm157, %v573, 0.0
  %591 = vadd.xlane.f32.xlu0 %v590
  %v592 = vpop.xlane.xlu0 %591
  %v593 = vsel %vm176, %v574, 0.0
  %594 = vadd.xlane.f32.xlu0 %v593
  %v595 = vpop.xlane.xlu0 %594
  %v596 = vmul.f32 %v577, %v186
  %v597 = vmul.f32 %v580, %v186
  %v598 = vmul.f32 %v583, %v186
  %v599 = vmul.f32 %v586, %v186
  %v600 = vmul.f32 %v589, %v186
  %v601 = vmul.f32 %v592, %v186
  %v602 = vmul.f32 %v595, %v186
  %v603 = vadd.f32 %v596, 1e-05
  %v604 = vadd.f32 %v597, 1e-05
  %v605 = vadd.f32 %v598, 1e-05
  %v606 = vadd.f32 %v599, 1e-05
  %v607 = vadd.f32 %v600, 1e-05
  %v608 = vadd.f32 %v601, 1e-05
  %v609 = vadd.f32 %v602, 1e-05
  %v610 = vrsqrt.pop %v603
  %v611 = vmul.f32 %v610, %v603
  %v612 = vmul.f32 %v611, %v610
  %v613 = vmul.f32 0.5, %v612
  %v614 = vsub.f32 1.5, %v613
  %v615 = vmul.f32 %v610, %v614
  %vm616 = vweird.f32 %v603
  %vm617 = vweird.f32 %v610
  %vm618 = vmor %vm616, %vm617
  %v619 = vsel %vm618, %v610, %v615
  %v620 = vrsqrt.pop %v604
  %v621 = vmul.f32 %v620, %v604
  %v622 = vmul.f32 %v621, %v620
  %v623 = vmul.f32 0.5, %v622
  %v624 = vsub.f32 1.5, %v623
  %v625 = vmul.f32 %v620, %v624
  %vm626 = vweird.f32 %v604
  %vm627 = vweird.f32 %v620
  %vm628 = vmor %vm626, %vm627
  %v629 = vsel %vm628, %v620, %v625
  %v630 = vrsqrt.pop %v605
  %v631 = vmul.f32 %v630, %v605
  %v632 = vmul.f32 %v631, %v630
  %v633 = vmul.f32 0.5, %v632
  %v634 = vsub.f32 1.5, %v633
  %v635 = vmul.f32 %v630, %v634
  %vm636 = vweird.f32 %v605
  %vm637 = vweird.f32 %v630
  %vm638 = vmor %vm636, %vm637
  %v639 = vsel %vm638, %v630, %v635
  %v640 = vrsqrt.pop %v606
  %v641 = vmul.f32 %v640, %v606
  %v642 = vmul.f32 %v641, %v640
  %v643 = vmul.f32 0.5, %v642
  %v644 = vsub.f32 1.5, %v643
  %v645 = vmul.f32 %v640, %v644
  %vm646 = vweird.f32 %v606
  %vm647 = vweird.f32 %v640
  %vm648 = vmor %vm646, %vm647
  %v649 = vsel %vm648, %v640, %v645
  %v650 = vrsqrt.pop %v607
  %v651 = vmul.f32 %v650, %v607
  %v652 = vmul.f32 %v651, %v650
  %v653 = vmul.f32 0.5, %v652
  %v654 = vsub.f32 1.5, %v653
  %v655 = vmul.f32 %v650, %v654
  %vm656 = vweird.f32 %v607
  %vm657 = vweird.f32 %v650
  %vm658 = vmor %vm656, %vm657
  %v659 = vsel %vm658, %v650, %v655
  %v660 = vrsqrt.pop %v608
  %v661 = vmul.f32 %v660, %v608
  %v662 = vmul.f32 %v661, %v660
  %v663 = vmul.f32 0.5, %v662
  %v664 = vsub.f32 1.5, %v663
  %v665 = vmul.f32 %v660, %v664
  %vm666 = vweird.f32 %v608
  %vm667 = vweird.f32 %v660
  %vm668 = vmor %vm666, %vm667
  %v669 = vsel %vm668, %v660, %v665
  %v670 = vrsqrt.pop %v609
  %v671 = vmul.f32 %v670, %v609
  %v672 = vmul.f32 %v671, %v670
  %v673 = vmul.f32 0.5, %v672
  %v674 = vsub.f32 1.5, %v673
  %v675 = vmul.f32 %v670, %v674
  %vm676 = vweird.f32 %v609
  %vm677 = vweird.f32 %v670
  %vm678 = vmor %vm676, %vm677
  %v679 = vsel %vm678, %v670, %v675
  %v680 = vmul.f32 %v561, %v619
  %v681 = vmul.f32 %v562, %v629
  %v682 = vmul.f32 %v563, %v639
  %v683 = vmul.f32 %v564, %v649
  %v684 = vmul.f32 %v565, %v659
  %v685 = vmul.f32 %v566, %v669
  %v686 = vmul.f32 %v567, %v679
  %v688 = vperm.slane %v531, 0
  %v690 = vmul.f32 %v680, %v688
  %v691 = vmul.f32 %v681, %v688
  %v692 = vmul.f32 %v682, %v688
  %v693 = vmul.f32 %v683, %v688
  %v694 = vmul.f32 %v684, %v688
  %v695 = vmul.f32 %v685, %v688
  %v696 = vmul.f32 %v686, %v688
  %v698 = vperm.slane %v532, 0
  %v700 = vadd.f32 %v690, %v698
  %v701 = vadd.f32 %v691, %v698
  %v702 = vadd.f32 %v692, %v698
  %v703 = vadd.f32 %v693, %v698
  %v704 = vadd.f32 %v694, %v698
  %v705 = vadd.f32 %v695, %v698
  %v706 = vadd.f32 %v696, %v698
  %v707 = vmax.f32 %v700, 0.0
  %v708 = vmax.f32 %v701, 0.0
  %v709 = vmax.f32 %v702, 0.0
  %v710 = vmax.f32 %v703, 0.0
  %v711 = vmax.f32 %v704, 0.0
  %v712 = vmax.f32 %v705, 0.0
  %v713 = vmax.f32 %v706, 0.0
  %v714 = vld [vmem:[%s9] sm:$0xf]
  %v715 = vld [vmem:[%s10] sm:$0x1]
  %v717 = vperm.slane %v715, 0
  %720 = vset.pattern.permute.xlu0 0
  %721 = vperm.xlu0 %720, %v707
  %v722 = vpop.permute.xlu0 %721
  %725 = vset.pattern.permute.xlu0 0
  %726 = vperm.xlu0 %725, %v708
  %v727 = vpop.permute.xlu0 %726
  %730 = vset.pattern.permute.xlu0 0
  %731 = vperm.xlu0 %730, %v709
  %v732 = vpop.permute.xlu0 %731
  %735 = vset.pattern.permute.xlu0 0
  %736 = vperm.xlu0 %735, %v710
  %v737 = vpop.permute.xlu0 %736
  %740 = vset.pattern.permute.xlu0 0
  %741 = vperm.xlu0 %740, %v711
  %v742 = vpop.permute.xlu0 %741
  %745 = vset.pattern.permute.xlu0 0
  %746 = vperm.xlu0 %745, %v712
  %v747 = vpop.permute.xlu0 %746
  %750 = vset.pattern.permute.xlu0 0
  %751 = vperm.xlu0 %750, %v713
  %v752 = vpop.permute.xlu0 %751
  %v754 = vperm.slane %v714, 0
  %v755 = vmul.f32 %v722, %v754
  %v756 = vmul.f32 %v727, %v754
  %v757 = vmul.f32 %v732, %v754
  %v758 = vmul.f32 %v737, %v754
  %v759 = vmul.f32 %v742, %v754
  %v760 = vmul.f32 %v747, %v754
  %v761 = vmul.f32 %v752, %v754
  %v762 = vadd.f32 %v717, %v755
  %v763 = vadd.f32 %v717, %v756
  %v764 = vadd.f32 %v717, %v757
  %v765 = vadd.f32 %v717, %v758
  %v766 = vadd.f32 %v717, %v759
  %v767 = vadd.f32 %v717, %v760
  %v768 = vadd.f32 %v717, %v761
  %769 = vset.pattern.permute.xlu0 1
  %770 = vperm.xlu0 %769, %v707
  %v771 = vpop.permute.xlu0 %770
  %773 = vset.pattern.permute.xlu0 1
  %774 = vperm.xlu0 %773, %v708
  %v775 = vpop.permute.xlu0 %774
  %777 = vset.pattern.permute.xlu0 1
  %778 = vperm.xlu0 %777, %v709
  %v779 = vpop.permute.xlu0 %778
  %781 = vset.pattern.permute.xlu0 1
  %782 = vperm.xlu0 %781, %v710
  %v783 = vpop.permute.xlu0 %782
  %785 = vset.pattern.permute.xlu0 1
  %786 = vperm.xlu0 %785, %v711
  %v787 = vpop.permute.xlu0 %786
  %789 = vset.pattern.permute.xlu0 1
  %790 = vperm.xlu0 %789, %v712
  %v791 = vpop.permute.xlu0 %790
  %793 = vset.pattern.permute.xlu0 1
  %794 = vperm.xlu0 %793, %v713
  %v795 = vpop.permute.xlu0 %794
  %v797 = vperm.slane %v714, 1
  %v798 = vmul.f32 %v771, %v797
  %v799 = vmul.f32 %v775, %v797
  %v800 = vmul.f32 %v779, %v797
  %v801 = vmul.f32 %v783, %v797
  %v802 = vmul.f32 %v787, %v797
  %v803 = vmul.f32 %v791, %v797
  %v804 = vmul.f32 %v795, %v797
  %v805 = vadd.f32 %v762, %v798
  %v806 = vadd.f32 %v763, %v799
  %v807 = vadd.f32 %v764, %v800
  %v808 = vadd.f32 %v765, %v801
  %v809 = vadd.f32 %v766, %v802
  %v810 = vadd.f32 %v767, %v803
  %v811 = vadd.f32 %v768, %v804
  %812 = vset.pattern.permute.xlu0 2
  %813 = vperm.xlu0 %812, %v707
  %v814 = vpop.permute.xlu0 %813
  %816 = vset.pattern.permute.xlu0 2
  %817 = vperm.xlu0 %816, %v708
  %v818 = vpop.permute.xlu0 %817
  %820 = vset.pattern.permute.xlu0 2
  %821 = vperm.xlu0 %820, %v709
  %v822 = vpop.permute.xlu0 %821
  %824 = vset.pattern.permute.xlu0 2
  %825 = vperm.xlu0 %824, %v710
  %v826 = vpop.permute.xlu0 %825
  %828 = vset.pattern.permute.xlu0 2
  %829 = vperm.xlu0 %828, %v711
  %v830 = vpop.permute.xlu0 %829
  %832 = vset.pattern.permute.xlu0 2
  %833 = vperm.xlu0 %832, %v712
  %v834 = vpop.permute.xlu0 %833
  %836 = vset.pattern.permute.xlu0 2
  %837 = vperm.xlu0 %836, %v713
  %v838 = vpop.permute.xlu0 %837
  %v840 = vperm.slane %v714, 2
  %v841 = vmul.f32 %v814, %v840
  %v842 = vmul.f32 %v818, %v840
  %v843 = vmul.f32 %v822, %v840
  %v844 = vmul.f32 %v826, %v840
  %v845 = vmul.f32 %v830, %v840
  %v846 = vmul.f32 %v834, %v840
  %v847 = vmul.f32 %v838, %v840
  %v848 = vadd.f32 %v805, %v841
  %v849 = vadd.f32 %v806, %v842
  %v850 = vadd.f32 %v807, %v843
  %v851 = vadd.f32 %v808, %v844
  %v852 = vadd.f32 %v809, %v845
  %v853 = vadd.f32 %v810, %v846
  %v854 = vadd.f32 %v811, %v847
  %855 = vset.pattern.permute.xlu0 3
  %856 = vperm.xlu0 %855, %v707
  %v857 = vpop.permute.xlu0 %856
  %859 = vset.pattern.permute.xlu0 3
  %860 = vperm.xlu0 %859, %v708
  %v861 = vpop.permute.xlu0 %860
  %863 = vset.pattern.permute.xlu0 3
  %864 = vperm.xlu0 %863, %v709
  %v865 = vpop.permute.xlu0 %864
  %867 = vset.pattern.permute.xlu0 3
  %868 = vperm.xlu0 %867, %v710
  %v869 = vpop.permute.xlu0 %868
  %871 = vset.pattern.permute.xlu0 3
  %872 = vperm.xlu0 %871, %v711
  %v873 = vpop.permute.xlu0 %872
  %875 = vset.pattern.permute.xlu0 3
  %876 = vperm.xlu0 %875, %v712
  %v877 = vpop.permute.xlu0 %876
  %879 = vset.pattern.permute.xlu0 3
  %880 = vperm.xlu0 %879, %v713
  %v881 = vpop.permute.xlu0 %880
  %v883 = vperm.slane %v714, 3
  %v884 = vmul.f32 %v857, %v883
  %v885 = vmul.f32 %v861, %v883
  %v886 = vmul.f32 %v865, %v883
  %v887 = vmul.f32 %v869, %v883
  %v888 = vmul.f32 %v873, %v883
  %v889 = vmul.f32 %v877, %v883
  %v890 = vmul.f32 %v881, %v883
  %v891 = vadd.f32 %v848, %v884
  %v892 = vadd.f32 %v849, %v885
  %v893 = vadd.f32 %v850, %v886
  %v894 = vadd.f32 %v851, %v887
  %v895 = vadd.f32 %v852, %v888
  %v896 = vadd.f32 %v853, %v889
  %v897 = vadd.f32 %v854, %v890
  %v898 = vld [vmem:[%s11] sm:$0x1]
  %v899 = vld [vmem:[%s12] sm:$0x1]
  %v900 = vsel %vm157, %v891, 0.0
  %901 = vadd.xlane.f32.xlu0 %v900
  %v902 = vpop.xlane.xlu0 %901
  %v903 = vsel %vm157, %v892, 0.0
  %904 = vadd.xlane.f32.xlu0 %v903
  %v905 = vpop.xlane.xlu0 %904
  %v906 = vsel %vm157, %v893, 0.0
  %907 = vadd.xlane.f32.xlu0 %v906
  %v908 = vpop.xlane.xlu0 %907
  %v909 = vsel %vm157, %v894, 0.0
  %910 = vadd.xlane.f32.xlu0 %v909
  %v911 = vpop.xlane.xlu0 %910
  %v912 = vsel %vm157, %v895, 0.0
  %913 = vadd.xlane.f32.xlu0 %v912
  %v914 = vpop.xlane.xlu0 %913
  %v915 = vsel %vm157, %v896, 0.0
  %916 = vadd.xlane.f32.xlu0 %v915
  %v917 = vpop.xlane.xlu0 %916
  %v918 = vsel %vm176, %v897, 0.0
  %919 = vadd.xlane.f32.xlu0 %v918
  %v920 = vpop.xlane.xlu0 %919
  %v921 = vmul.f32 %v902, %v186
  %v922 = vmul.f32 %v905, %v186
  %v923 = vmul.f32 %v908, %v186
  %v924 = vmul.f32 %v911, %v186
  %v925 = vmul.f32 %v914, %v186
  %v926 = vmul.f32 %v917, %v186
  %v927 = vmul.f32 %v920, %v186
  %v928 = vsub.f32 %v891, %v921
  %v929 = vsub.f32 %v892, %v922
  %v930 = vsub.f32 %v893, %v923
  %v931 = vsub.f32 %v894, %v924
  %v932 = vsub.f32 %v895, %v925
  %v933 = vsub.f32 %v896, %v926
  %v934 = vsub.f32 %v897, %v927
  %v935 = vmul.f32 %v928, %v928
  %v936 = vmul.f32 %v929, %v929
  %v937 = vmul.f32 %v930, %v930
  %v938 = vmul.f32 %v931, %v931
  %v939 = vmul.f32 %v932, %v932
  %v940 = vmul.f32 %v933, %v933
  %v941 = vmul.f32 %v934, %v934
  %v942 = vsel %vm157, %v935, 0.0
  %943 = vadd.xlane.f32.xlu0 %v942
  %v944 = vpop.xlane.xlu0 %943
  %v945 = vsel %vm157, %v936, 0.0
  %946 = vadd.xlane.f32.xlu0 %v945
  %v947 = vpop.xlane.xlu0 %946
  %v948 = vsel %vm157, %v937, 0.0
  %949 = vadd.xlane.f32.xlu0 %v948
  %v950 = vpop.xlane.xlu0 %949
  %v951 = vsel %vm157, %v938, 0.0
  %952 = vadd.xlane.f32.xlu0 %v951
  %v953 = vpop.xlane.xlu0 %952
  %v954 = vsel %vm157, %v939, 0.0
  %955 = vadd.xlane.f32.xlu0 %v954
  %v956 = vpop.xlane.xlu0 %955
  %v957 = vsel %vm157, %v940, 0.0
  %958 = vadd.xlane.f32.xlu0 %v957
  %v959 = vpop.xlane.xlu0 %958
  %v960 = vsel %vm176, %v941, 0.0
  %961 = vadd.xlane.f32.xlu0 %v960
  %v962 = vpop.xlane.xlu0 %961
  %v963 = vmul.f32 %v944, %v186
  %v964 = vmul.f32 %v947, %v186
  %v965 = vmul.f32 %v950, %v186
  %v966 = vmul.f32 %v953, %v186
  %v967 = vmul.f32 %v956, %v186
  %v968 = vmul.f32 %v959, %v186
  %v969 = vmul.f32 %v962, %v186
  %v970 = vadd.f32 %v963, 1e-05
  %v971 = vadd.f32 %v964, 1e-05
  %v972 = vadd.f32 %v965, 1e-05
  %v973 = vadd.f32 %v966, 1e-05
  %v974 = vadd.f32 %v967, 1e-05
  %v975 = vadd.f32 %v968, 1e-05
  %v976 = vadd.f32 %v969, 1e-05
  %v977 = vrsqrt.pop %v970
  %v978 = vmul.f32 %v977, %v970
  %v979 = vmul.f32 %v978, %v977
  %v980 = vmul.f32 0.5, %v979
  %v981 = vsub.f32 1.5, %v980
  %v982 = vmul.f32 %v977, %v981
  %vm983 = vweird.f32 %v970
  %vm984 = vweird.f32 %v977
  %vm985 = vmor %vm983, %vm984
  %v986 = vsel %vm985, %v977, %v982
  %v987 = vrsqrt.pop %v971
  %v988 = vmul.f32 %v987, %v971
  %v989 = vmul.f32 %v988, %v987
  %v990 = vmul.f32 0.5, %v989
  %v991 = vsub.f32 1.5, %v990
  %v992 = vmul.f32 %v987, %v991
  %vm993 = vweird.f32 %v971
  %vm994 = vweird.f32 %v987
  %vm995 = vmor %vm993, %vm994
  %v996 = vsel %vm995, %v987, %v992
  %v997 = vrsqrt.pop %v972
  %v998 = vmul.f32 %v997, %v972
  %v999 = vmul.f32 %v998, %v997
  %v1000 = vmul.f32 0.5, %v999
  %v1001 = vsub.f32 1.5, %v1000
  %v1002 = vmul.f32 %v997, %v1001
  %vm1003 = vweird.f32 %v972
  %vm1004 = vweird.f32 %v997
  %vm1005 = vmor %vm1003, %vm1004
  %v1006 = vsel %vm1005, %v997, %v1002
  %v1007 = vrsqrt.pop %v973
  %v1008 = vmul.f32 %v1007, %v973
  %v1009 = vmul.f32 %v1008, %v1007
  %v1010 = vmul.f32 0.5, %v1009
  %v1011 = vsub.f32 1.5, %v1010
  %v1012 = vmul.f32 %v1007, %v1011
  %vm1013 = vweird.f32 %v973
  %vm1014 = vweird.f32 %v1007
  %vm1015 = vmor %vm1013, %vm1014
  %v1016 = vsel %vm1015, %v1007, %v1012
  %v1017 = vrsqrt.pop %v974
  %v1018 = vmul.f32 %v1017, %v974
  %v1019 = vmul.f32 %v1018, %v1017
  %v1020 = vmul.f32 0.5, %v1019
  %v1021 = vsub.f32 1.5, %v1020
  %v1022 = vmul.f32 %v1017, %v1021
  %vm1023 = vweird.f32 %v974
  %vm1024 = vweird.f32 %v1017
  %vm1025 = vmor %vm1023, %vm1024
  %v1026 = vsel %vm1025, %v1017, %v1022
  %v1027 = vrsqrt.pop %v975
  %v1028 = vmul.f32 %v1027, %v975
  %v1029 = vmul.f32 %v1028, %v1027
  %v1030 = vmul.f32 0.5, %v1029
  %v1031 = vsub.f32 1.5, %v1030
  %v1032 = vmul.f32 %v1027, %v1031
  %vm1033 = vweird.f32 %v975
  %vm1034 = vweird.f32 %v1027
  %vm1035 = vmor %vm1033, %vm1034
  %v1036 = vsel %vm1035, %v1027, %v1032
  %v1037 = vrsqrt.pop %v976
  %v1038 = vmul.f32 %v1037, %v976
  %v1039 = vmul.f32 %v1038, %v1037
  %v1040 = vmul.f32 0.5, %v1039
  %v1041 = vsub.f32 1.5, %v1040
  %v1042 = vmul.f32 %v1037, %v1041
  %vm1043 = vweird.f32 %v976
  %vm1044 = vweird.f32 %v1037
  %vm1045 = vmor %vm1043, %vm1044
  %v1046 = vsel %vm1045, %v1037, %v1042
  %v1047 = vmul.f32 %v928, %v986
  %v1048 = vmul.f32 %v929, %v996
  %v1049 = vmul.f32 %v930, %v1006
  %v1050 = vmul.f32 %v931, %v1016
  %v1051 = vmul.f32 %v932, %v1026
  %v1052 = vmul.f32 %v933, %v1036
  %v1053 = vmul.f32 %v934, %v1046
  %v1055 = vperm.slane %v898, 0
  %v1057 = vmul.f32 %v1047, %v1055
  %v1058 = vmul.f32 %v1048, %v1055
  %v1059 = vmul.f32 %v1049, %v1055
  %v1060 = vmul.f32 %v1050, %v1055
  %v1061 = vmul.f32 %v1051, %v1055
  %v1062 = vmul.f32 %v1052, %v1055
  %v1063 = vmul.f32 %v1053, %v1055
  %v1065 = vperm.slane %v899, 0
  %v1067 = vadd.f32 %v1057, %v1065
  %v1068 = vadd.f32 %v1058, %v1065
  %v1069 = vadd.f32 %v1059, %v1065
  %v1070 = vadd.f32 %v1060, %v1065
  %v1071 = vadd.f32 %v1061, %v1065
  %v1072 = vadd.f32 %v1062, %v1065
  %v1073 = vadd.f32 %v1063, %v1065
  %v1074 = vmax.f32 %v1067, 0.0
  %v1075 = vmax.f32 %v1068, 0.0
  %v1076 = vmax.f32 %v1069, 0.0
  %v1077 = vmax.f32 %v1070, 0.0
  %v1078 = vmax.f32 %v1071, 0.0
  %v1079 = vmax.f32 %v1072, 0.0
  %v1080 = vmax.f32 %v1073, 0.0
  %v1081 = vld [vmem:[%s13] sm:$0xf]
  %v1082 = vld [vmem:[%s14] sm:$0x1]
  %v1084 = vperm.slane %v1082, 0
  %1087 = vset.pattern.permute.xlu0 0
  %1088 = vperm.xlu0 %1087, %v1074
  %v1089 = vpop.permute.xlu0 %1088
  %1092 = vset.pattern.permute.xlu0 0
  %1093 = vperm.xlu0 %1092, %v1075
  %v1094 = vpop.permute.xlu0 %1093
  %1097 = vset.pattern.permute.xlu0 0
  %1098 = vperm.xlu0 %1097, %v1076
  %v1099 = vpop.permute.xlu0 %1098
  %1102 = vset.pattern.permute.xlu0 0
  %1103 = vperm.xlu0 %1102, %v1077
  %v1104 = vpop.permute.xlu0 %1103
  %1107 = vset.pattern.permute.xlu0 0
  %1108 = vperm.xlu0 %1107, %v1078
  %v1109 = vpop.permute.xlu0 %1108
  %1112 = vset.pattern.permute.xlu0 0
  %1113 = vperm.xlu0 %1112, %v1079
  %v1114 = vpop.permute.xlu0 %1113
  %1117 = vset.pattern.permute.xlu0 0
  %1118 = vperm.xlu0 %1117, %v1080
  %v1119 = vpop.permute.xlu0 %1118
  %v1121 = vperm.slane %v1081, 0
  %v1122 = vmul.f32 %v1089, %v1121
  %v1123 = vmul.f32 %v1094, %v1121
  %v1124 = vmul.f32 %v1099, %v1121
  %v1125 = vmul.f32 %v1104, %v1121
  %v1126 = vmul.f32 %v1109, %v1121
  %v1127 = vmul.f32 %v1114, %v1121
  %v1128 = vmul.f32 %v1119, %v1121
  %v1129 = vadd.f32 %v1084, %v1122
  %v1130 = vadd.f32 %v1084, %v1123
  %v1131 = vadd.f32 %v1084, %v1124
  %v1132 = vadd.f32 %v1084, %v1125
  %v1133 = vadd.f32 %v1084, %v1126
  %v1134 = vadd.f32 %v1084, %v1127
  %v1135 = vadd.f32 %v1084, %v1128
  %1136 = vset.pattern.permute.xlu0 1
  %1137 = vperm.xlu0 %1136, %v1074
  %v1138 = vpop.permute.xlu0 %1137
  %1140 = vset.pattern.permute.xlu0 1
  %1141 = vperm.xlu0 %1140, %v1075
  %v1142 = vpop.permute.xlu0 %1141
  %1144 = vset.pattern.permute.xlu0 1
  %1145 = vperm.xlu0 %1144, %v1076
  %v1146 = vpop.permute.xlu0 %1145
  %1148 = vset.pattern.permute.xlu0 1
  %1149 = vperm.xlu0 %1148, %v1077
  %v1150 = vpop.permute.xlu0 %1149
  %1152 = vset.pattern.permute.xlu0 1
  %1153 = vperm.xlu0 %1152, %v1078
  %v1154 = vpop.permute.xlu0 %1153
  %1156 = vset.pattern.permute.xlu0 1
  %1157 = vperm.xlu0 %1156, %v1079
  %v1158 = vpop.permute.xlu0 %1157
  %1160 = vset.pattern.permute.xlu0 1
  %1161 = vperm.xlu0 %1160, %v1080
  %v1162 = vpop.permute.xlu0 %1161
  %v1164 = vperm.slane %v1081, 1
  %v1165 = vmul.f32 %v1138, %v1164
  %v1166 = vmul.f32 %v1142, %v1164
  %v1167 = vmul.f32 %v1146, %v1164
  %v1168 = vmul.f32 %v1150, %v1164
  %v1169 = vmul.f32 %v1154, %v1164
  %v1170 = vmul.f32 %v1158, %v1164
  %v1171 = vmul.f32 %v1162, %v1164
  %v1172 = vadd.f32 %v1129, %v1165
  %v1173 = vadd.f32 %v1130, %v1166
  %v1174 = vadd.f32 %v1131, %v1167
  %v1175 = vadd.f32 %v1132, %v1168
  %v1176 = vadd.f32 %v1133, %v1169
  %v1177 = vadd.f32 %v1134, %v1170
  %v1178 = vadd.f32 %v1135, %v1171
  %1179 = vset.pattern.permute.xlu0 2
  %1180 = vperm.xlu0 %1179, %v1074
  %v1181 = vpop.permute.xlu0 %1180
  %1183 = vset.pattern.permute.xlu0 2
  %1184 = vperm.xlu0 %1183, %v1075
  %v1185 = vpop.permute.xlu0 %1184
  %1187 = vset.pattern.permute.xlu0 2
  %1188 = vperm.xlu0 %1187, %v1076
  %v1189 = vpop.permute.xlu0 %1188
  %1191 = vset.pattern.permute.xlu0 2
  %1192 = vperm.xlu0 %1191, %v1077
  %v1193 = vpop.permute.xlu0 %1192
  %1195 = vset.pattern.permute.xlu0 2
  %1196 = vperm.xlu0 %1195, %v1078
  %v1197 = vpop.permute.xlu0 %1196
  %1199 = vset.pattern.permute.xlu0 2
  %1200 = vperm.xlu0 %1199, %v1079
  %v1201 = vpop.permute.xlu0 %1200
  %1203 = vset.pattern.permute.xlu0 2
  %1204 = vperm.xlu0 %1203, %v1080
  %v1205 = vpop.permute.xlu0 %1204
  %v1207 = vperm.slane %v1081, 2
  %v1208 = vmul.f32 %v1181, %v1207
  %v1209 = vmul.f32 %v1185, %v1207
  %v1210 = vmul.f32 %v1189, %v1207
  %v1211 = vmul.f32 %v1193, %v1207
  %v1212 = vmul.f32 %v1197, %v1207
  %v1213 = vmul.f32 %v1201, %v1207
  %v1214 = vmul.f32 %v1205, %v1207
  %v1215 = vadd.f32 %v1172, %v1208
  %v1216 = vadd.f32 %v1173, %v1209
  %v1217 = vadd.f32 %v1174, %v1210
  %v1218 = vadd.f32 %v1175, %v1211
  %v1219 = vadd.f32 %v1176, %v1212
  %v1220 = vadd.f32 %v1177, %v1213
  %v1221 = vadd.f32 %v1178, %v1214
  %1222 = vset.pattern.permute.xlu0 3
  %1223 = vperm.xlu0 %1222, %v1074
  %v1224 = vpop.permute.xlu0 %1223
  %1226 = vset.pattern.permute.xlu0 3
  %1227 = vperm.xlu0 %1226, %v1075
  %v1228 = vpop.permute.xlu0 %1227
  %1230 = vset.pattern.permute.xlu0 3
  %1231 = vperm.xlu0 %1230, %v1076
  %v1232 = vpop.permute.xlu0 %1231
  %1234 = vset.pattern.permute.xlu0 3
  %1235 = vperm.xlu0 %1234, %v1077
  %v1236 = vpop.permute.xlu0 %1235
  %1238 = vset.pattern.permute.xlu0 3
  %1239 = vperm.xlu0 %1238, %v1078
  %v1240 = vpop.permute.xlu0 %1239
  %1242 = vset.pattern.permute.xlu0 3
  %1243 = vperm.xlu0 %1242, %v1079
  %v1244 = vpop.permute.xlu0 %1243
  %1246 = vset.pattern.permute.xlu0 3
  %1247 = vperm.xlu0 %1246, %v1080
  %v1248 = vpop.permute.xlu0 %1247
  %v1250 = vperm.slane %v1081, 3
  %v1251 = vmul.f32 %v1224, %v1250
  %v1252 = vmul.f32 %v1228, %v1250
  %v1253 = vmul.f32 %v1232, %v1250
  %v1254 = vmul.f32 %v1236, %v1250
  %v1255 = vmul.f32 %v1240, %v1250
  %v1256 = vmul.f32 %v1244, %v1250
  %v1257 = vmul.f32 %v1248, %v1250
  %v1258 = vadd.f32 %v1215, %v1251
  %v1259 = vadd.f32 %v1216, %v1252
  %v1260 = vadd.f32 %v1217, %v1253
  %v1261 = vadd.f32 %v1218, %v1254
  %v1262 = vadd.f32 %v1219, %v1255
  %v1263 = vadd.f32 %v1220, %v1256
  %v1264 = vadd.f32 %v1221, %v1257
  %1265 = vst.msk [vmem:[%s15] sm:$0xff] %vm157, %v1258
  %1266 = vst.msk [vmem:[%s15 + $0x8] sm:$0xff] %vm157, %v1259
  %1267 = vst.msk [vmem:[%s15 + $0x10] sm:$0xff] %vm157, %v1260
  %1268 = vst.msk [vmem:[%s15 + $0x18] sm:$0xff] %vm157, %v1261
  %1269 = vst.msk [vmem:[%s15 + $0x20] sm:$0xff] %vm157, %v1262
  %1270 = vst.msk [vmem:[%s15 + $0x28] sm:$0xff] %vm157, %v1263
  %1271 = vst.msk [vmem:[%s15 + $0x30] sm:$0x1] %vm176, %v1264
  // Predicated region
  $region62: #{tpu_custom_call.1} parent=0 // pred_check
    _
  $region63: #{tpu_custom_call.1} parent=0 // pred_check_branch
    %1273 = sbr.rel (0) target = $region65
  $region64: #{tpu_custom_call.1} parent=0 // pred_region
    _
  $region65: #{tpu_custom_call.1} parent=0 // pred_fallthru
    _
  // Predicated region
  $region66: #{tpu_custom_call.1} parent=0 // pred_check
    _
  $region67: #{tpu_custom_call.1} parent=0 // pred_check_branch
    %1275 = sbr.rel (0) target = $region69
  $region68: #{tpu_custom_call.1} parent=0 // pred_region
    _
  $region69: #{tpu_custom_call.1} parent=0 // pred_fallthru
    _

</llo_original>
